<compile_context>
chip_gen: v5e
topology: v5e:2x2
jax: 0.10.0
libtpu: 0.0.40
codegen_flags: <defaults>
</compile_context>

<pallas_src>
import jax
import jax.numpy as jnp
from jax import lax
from jax.experimental import pallas as pl
from jax.experimental.pallas import tpu as pltpu


def _round_up(x: int, m: int) -> int:
    return ((x + m - 1) // m) * m


def _make_linear_util_kernel(tb: int, td: int, num_k: int, d_true: int):
    ngl = td // 128                      # number of 128-lane column chunks
    need_d_mask = (d_true % td) != 0     # static: only mask if D has a remainder

    def kernel(y_ref, beta_ref, o_ref, acc_ref):
        # y_ref:    (tb, td)      tile of Y (input dtype)
        # beta_ref: (num_k, td)   whole beta, f32, resident (constant index_map)
        # o_ref:    (tb, 1)       output block, resident across the k axis
        # acc_ref:  (tb, 128)     lane-dense f32 partial sums
        k = pl.program_id(1)

        @pl.when(k == 0)
        def _init():
            acc_ref[...] = jnp.zeros_like(acc_ref)

        y = y_ref[...].astype(jnp.float32)
        if need_d_mask:
            # Zero out garbage columns of the (only) partial D block.
            col = lax.broadcasted_iota(jnp.int32, (tb, td), 1)
            y = jnp.where(k * td + col < d_true, y, 0.0)

        if num_k == 1:
            b = beta_ref[...]                    # (1, td) f32, already in VMEM
        else:
            b = beta_ref[pl.ds(k, 1), :]         # (1, td) f32, already in VMEM
        prod = y * b                             # (tb, td) f32, VPU

        # Defer the cross-lane reduce: accumulate lane-dense partial sums with
        # pure VALU adds; no XLU work and no narrow store inside the k loop.
        acc = acc_ref[...]
        for g in range(ngl):
            acc = acc + prod[:, g * 128:(g + 1) * 128]
        acc_ref[...] = acc

        @pl.when(k == num_k - 1)
        def _finalize():
            o_ref[...] = jnp.sum(acc_ref[...], axis=-1,
                                 keepdims=True).astype(o_ref.dtype)

    return kernel


def linear_util_forward(Y, beta, *, min_pallas_elements=16384):
    """Pallas-TPU equivalent of `LinearUtil.forward`: Y @ beta (1-D result)."""
    B, D = Y.shape
    assert beta.shape == (D,)

    # Tiny problems: kernel-call + per-step overhead dwarfs the matvec.
    if B * D < min_pallas_elements:
        return jnp.dot(Y, beta.astype(Y.dtype), precision=lax.Precision.HIGHEST)

    itemsize = jnp.dtype(Y.dtype).itemsize

    # ---- Tile selection (mem-bound: big tiles, bounded VMEM footprint) ----
    TD_CAP = 4096                     # reduction-dim tile cap (multiple of 128)
    TB_CAP = 2048                     # batch-dim tile cap
    TILE_BYTES = 8 * 1024 * 1024      # target Y-tile size; x2 double buffering

    td = min(_round_up(D, 128), TD_CAP)
    num_k = pl.cdiv(D, td)
    d_pad = num_k * td                # beta (1-D) is padded to this, Y is NOT

    tb = (TILE_BYTES // (td * itemsize)) // 128 * 128
    tb = max(128, min(TB_CAP, tb))
    tb = min(tb, _round_up(B, 128))
    if B >= 256:
        # v7x megacore: guarantee >=2 batch tiles so both TCs stream HBM.
        tb = min(tb, max(128, (B // 2) // 128 * 128))
    num_b = pl.cdiv(B, tb)

    # beta: cheap 1-D zero-pad + reshape, pre-cast to f32 (no per-step astype).
    beta_f32 = beta.astype(jnp.float32)
    if d_pad != D:
        beta_f32 = jnp.pad(beta_f32, (0, d_pad - D))
    beta_2d = beta_f32.reshape(num_k, td)

    kernel = _make_linear_util_kernel(tb, td, num_k, D)

    out = pl.pallas_call(
        kernel,
        out_shape=jax.ShapeDtypeStruct((B, 1), Y.dtype),
        grid_spec=pltpu.PrefetchScalarGridSpec(
            num_scalar_prefetch=0,
            grid=(num_b, num_k),
            in_specs=[
                pl.BlockSpec((tb, td), lambda i, k: (i, k)),      # Y tile
                pl.BlockSpec((num_k, td), lambda i, k: (0, 0)),   # beta, resident
            ],
            out_specs=pl.BlockSpec((tb, 1), lambda i, k: (i, 0)),
            scratch_shapes=[pltpu.VMEM((tb, 128), jnp.float32)],  # lane-dense acc
        ),
        compiler_params=pltpu.CompilerParams(
            dimension_semantics=("parallel", "arbitrary"),
            vmem_limit_bytes=48 * 1024 * 1024,
        ),
        cost_estimate=pl.CostEstimate(
            flops=2 * B * D,
            transcendentals=0,
            bytes_accessed=B * D * itemsize + d_pad * 4 + B * itemsize,
        ),
    )(Y, beta_2d)

    return out[:, 0]  # match PyTorch: 1-D result of shape (batch,)


if __name__ == "__main__":
    key = jax.random.PRNGKey(0)
    k1, k2, k3, k4, k5, k6 = jax.random.split(key, 6)

    # Case 1: aligned shape, single reduction block, >=2 batch tiles (v7x rule).
    B1, D1 = 256, 512
    Y1 = jax.random.normal(k1, (B1, D1), dtype=jnp.float32)
    b1 = jax.random.normal(k2, (D1,), dtype=jnp.float32)
    o1 = linear_util_forward(Y1, b1)
    jax.block_until_ready(o1)
    r1 = jnp.dot(Y1, b1, precision=lax.Precision.HIGHEST)
    assert o1.shape == (B1,)
    assert jnp.allclose(o1, r1, atol=1e-3, rtol=1e-3)

    # Case 2: small, non-aligned shape -> exercises the in-kernel D mask and
    # clamped partial-block reads/writes (no jnp.pad of Y anywhere).
    B2, D2 = 40, 200
    Y2 = jax.random.normal(k3, (B2, D2), dtype=jnp.float32)
    b2 = jax.random.normal(k4, (D2,), dtype=jnp.float32)
    o2 = linear_util_forward(Y2, b2, min_pallas_elements=0)
    jax.block_until_ready(o2)
    r2 = jnp.dot(Y2, b2, precision=lax.Precision.HIGHEST)
    assert o2.shape == (B2,)
    assert jnp.allclose(o2, r2, atol=1e-3, rtol=1e-3)

    # Case 3: multi-step reduction (D > TD_CAP) with a masked remainder block.
    B3, D3 = 384, 4200
    Y3 = jax.random.normal(k5, (B3, D3), dtype=jnp.float32)
    b3 = jax.random.normal(k6, (D3,), dtype=jnp.float32)
    o3 = linear_util_forward(Y3, b3)
    jax.block_until_ready(o3)
    r3 = jnp.dot(Y3, b3, precision=lax.Precision.HIGHEST)
    assert o3.shape == (B3,)
    assert jnp.allclose(o3, r3, atol=1e-2, rtol=1e-3)

    # Case 4: tiny problem -> wrapper dispatches to plain XLA dot.
    B4, D4 = 8, 32
    Y4 = jax.random.normal(k1, (B4, D4), dtype=jnp.float32)
    b4 = jax.random.normal(k2, (D4,), dtype=jnp.float32)
    o4 = linear_util_forward(Y4, b4)
    jax.block_until_ready(o4)
    r4 = jnp.dot(Y4, b4, precision=lax.Precision.HIGHEST)
    assert o4.shape == (B4,)
    assert jnp.allclose(o4, r4, atol=1e-3, rtol=1e-3)

    print("KERNEL_OK")
</pallas_src>

<mosaic_0001>
module attributes {stable_mosaic.version = 11 : i64} {
  func.func @kernel(%arg0: i32, %arg1: i32, %arg2: memref<128x512xf32, #tpu.memory_space<vmem>>, %arg3: memref<1x512xf32, #tpu.memory_space<vmem>>, %arg4: memref<128x1xf32, #tpu.memory_space<vmem>>, %arg5: memref<128x128xf32, #tpu.memory_space<vmem>>) attributes {dimension_semantics = [#tpu.dimension_semantics<parallel>, #tpu.dimension_semantics<arbitrary>], iteration_bounds = array<i64: 2, 1>, scalar_prefetch = 0 : i64, scratch_operands = 1 : i64, tpu.core_type = #tpu.core_type<tc>, window_params = [{transform_indices = @transform_0, window_bounds = array<i64: 128, 512>}, {pipeline_mode = #tpu.pipeline_mode<synchronous>, transform_indices = @transform_1, window_bounds = array<i64: 1, 512>}, {transform_indices = @transform_2, window_bounds = array<i64: 128, 1>}]} {
    %c0_i32 = arith.constant 0 : i32
    %0 = arith.cmpi eq, %arg1, %c0_i32 : i32
    %1 = arith.extui %0 : i1 to i32
    %c0_i32_0 = arith.constant 0 : i32
    %2 = arith.cmpi ne, %1, %c0_i32_0 : i32
    scf.if %2 {
      %cst = arith.constant 0.000000e+00 : f32
      %20 = vector.broadcast %cst : f32 to vector<128x128xf32>
      %c0_10 = arith.constant 0 : index
      %c0_11 = arith.constant 0 : index
      %21 = vector.load %arg5[%c0_10, %c0_11] : memref<128x128xf32, #tpu.memory_space<vmem>>, vector<128x128xf32>
      tpu.vector_store %arg5[%c0_10, %c0_11], %20 {strides = array<i32>} : memref<128x128xf32, #tpu.memory_space<vmem>>, vector<128x128xf32>,
    } else {
    }
    %c0 = arith.constant 0 : index
    %c0_1 = arith.constant 0 : index
    %3 = vector.load %arg2[%c0, %c0_1] : memref<128x512xf32, #tpu.memory_space<vmem>>, vector<128x512xf32>
    %c0_2 = arith.constant 0 : index
    %c0_3 = arith.constant 0 : index
    %4 = vector.load %arg3[%c0_2, %c0_3] : memref<1x512xf32, #tpu.memory_space<vmem>>, vector<1x512xf32>
    %5 = vector.broadcast %4 : vector<1x512xf32> to vector<128x512xf32>
    %6 = arith.mulf %3, %5 : vector<128x512xf32>
    %c0_4 = arith.constant 0 : index
    %c0_5 = arith.constant 0 : index
    %7 = vector.load %arg5[%c0_4, %c0_5] : memref<128x128xf32, #tpu.memory_space<vmem>>, vector<128x128xf32>
    %8 = vector.extract_strided_slice %6 {offsets = [0, 0], sizes = [128, 128], strides = [1, 1]} : vector<128x512xf32> to vector<128x128xf32>
    %9 = arith.addf %7, %8 : vector<128x128xf32>
    %10 = vector.extract_strided_slice %6 {offsets = [0, 128], sizes = [128, 128], strides = [1, 1]} : vector<128x512xf32> to vector<128x128xf32>
    %11 = arith.addf %9, %10 : vector<128x128xf32>
    %12 = vector.extract_strided_slice %6 {offsets = [0, 256], sizes = [128, 128], strides = [1, 1]} : vector<128x512xf32> to vector<128x128xf32>
    %13 = arith.addf %11, %12 : vector<128x128xf32>
    %14 = vector.extract_strided_slice %6 {offsets = [0, 384], sizes = [128, 128], strides = [1, 1]} : vector<128x512xf32> to vector<128x128xf32>
    %15 = arith.addf %13, %14 : vector<128x128xf32>
    %c0_6 = arith.constant 0 : index
    %c0_7 = arith.constant 0 : index
    %16 = vector.load %arg5[%c0_6, %c0_7] : memref<128x128xf32, #tpu.memory_space<vmem>>, vector<128x128xf32>
    tpu.vector_store %arg5[%c0_6, %c0_7], %15 {strides = array<i32>} : memref<128x128xf32, #tpu.memory_space<vmem>>, vector<128x128xf32>,
    %c0_i32_8 = arith.constant 0 : i32
    %17 = arith.cmpi eq, %arg1, %c0_i32_8 : i32
    %18 = arith.extui %17 : i1 to i32
    %c0_i32_9 = arith.constant 0 : i32
    %19 = arith.cmpi ne, %18, %c0_i32_9 : i32
    scf.if %19 {
      %c0_10 = arith.constant 0 : index
      %c0_11 = arith.constant 0 : index
      %20 = vector.load %arg5[%c0_10, %c0_11] : memref<128x128xf32, #tpu.memory_space<vmem>>, vector<128x128xf32>
      %cst = arith.constant dense<0.000000e+00> : vector<128xf32>
      %21 = vector.multi_reduction <add>, %20, %cst [1] : vector<128x128xf32> to vector<128xf32>
      %22 = vector.shape_cast %21 : vector<128xf32> to vector<128x1xf32>
      %c0_12 = arith.constant 0 : index
      %c0_13 = arith.constant 0 : index
      %23 = vector.load %arg4[%c0_12, %c0_13] : memref<128x1xf32, #tpu.memory_space<vmem>>, vector<128x1xf32>
      tpu.vector_store %arg4[%c0_12, %c0_13], %22 {strides = array<i32>} : memref<128x1xf32, #tpu.memory_space<vmem>>, vector<128x1xf32>,
    } else {
    }
    return
  }
  func.func @transform_0(%arg0: i32, %arg1: i32) -> (i32, i32) {
    %c0_i32 = arith.constant 0 : i32
    return %arg0, %arg1 : i32, i32
  }
  func.func @transform_1(%arg0: i32, %arg1: i32) -> (i32, i32) {
    %c0_i32 = arith.constant 0 : i32
    %c0_i32_0 = arith.constant 0 : i32
    %c0_i32_1 = arith.constant 0 : i32
    return %c0_i32, %c0_i32_0 : i32, i32
  }
  func.func @transform_2(%arg0: i32, %arg1: i32) -> (i32, i32) {
    %c0_i32 = arith.constant 0 : i32
    %c0_i32_0 = arith.constant 0 : i32
    return %arg0, %c0_i32 : i32, i32
  }
}

</mosaic_0001>

<llo_original>
// kernel: tpu_custom_call.1
$region0: #{tpu_custom_call.1}
  #allocation0 [shape = 'u32[]', space=smem, size = 0x4, offset = 0x4, fixed_abs, tag = 'smem constant byte address 0x4 - core index']
  #allocation1 [shape = 'u32[72,128]{1,0:T(1,128)}', space=vmem, size = 0x9000, scoped, tag = 'internal scratch']
  #allocation2 [shape = 'f32[128,128]{1,0:T(8,128)}', space=vmem, size = 0x10000, scoped, tag = 'scratch operand']
  %s0 = inlined_call_operand.hbm [shape: f32[256,512], index: 0, kind: input, shape index: {}]
  %s1 = inlined_call_operand.hbm [shape: f32[1,512], index: 1, kind: input, shape index: {}]
  %s2 = inlined_call_operand.vmem [shape: f32[256,1], index: 2, kind: output, shape index: {}]
  %s3 = sld [smem:[#allocation0]]
  $region57: #{tpu_custom_call.1} parent=0
    _
  %s5 = ssub.s32 1, %s3
  %s6 = scalar_select 0, %s5, %s3
  $region1: #{tpu_custom_call.1} parent=0
    #allocation3 [shape = 'u8[524288]{0}', space=vmem, size = 0x80000, scoped, tag = 'input window, operand 0']
    #allocation4 [shape = 's32[2]{0}', space=sflag, size = 0x8, scoped, tag = 'scoped memory for tpu_custom_call.1']
    #allocation5 [shape = 'u8[2048]{0}', space=vmem, size = 0x800, scoped, tag = 'input window, operand 1, single buffered']
    #allocation6 [shape = 's32[1]{0}', space=sflag, size = 0x4, scoped, tag = 'scoped memory for tpu_custom_call.1']
    %7 = vsyncpa [#allocation4], 0
    %s8 = scalar_lea.sflag [#allocation4], 1
    %9 = vsyncpa %s8, 0
    %10 = vsyncpa [#allocation6], 0
    loop: start=0, step=1, limit=4
    $region2: #{tpu_custom_call.1} parent=1 // loop_pre_header
      _
    $region3: #{tpu_custom_call.1} parent=1 // loop_header
      %s12 = sphi 0, %s16
      %p13 = scmp.ge.s32.totalorder %s12, 4
      %s19 = sphi 0, %s31
      %s20 = sphi 0, %s27
      %s21 = sphi 0, %s19
      %s22 = sphi 0, %s20
      %s23 = sphi 0, %s21
      %s24 = sphi 0, %s22
      %s36 = sphi 0, %s38
      %s39 = sphi 0, %s36
      %s40 = sphi 0, %s39
      %s56 = sphi 0, %s40
      %s60 = sphi 0, %s60
      %s62 = sphi 0, %s60
      %s63 = sphi 0, %s62
      %s77 = sphi 0, %s63
      %s83 = sphi 0, %s85
      %s86 = sphi 0, %s83
      %s87 = sphi 0, %s86
      %s103 = sphi 0, %s87
    $region4: #{tpu_custom_call.1} parent=1 // loop_header_branch
      %15 = sbr.rel (%p13) target = $region8
    $region5: #{tpu_custom_call.1} parent=1 // loop_body
      %s17 = ssub.s32 %s12, 1
      %s18 = ssub.s32 %s12, 2
      %s25 = sadd.s32 1, %s20
      %p26 = scmp.ge.s32.totalorder %s25, 1
      %s27 = scalar_select %p26, 0, %s25
      %s28 = sadd.s32 1, %s19
      %s29 = scalar_select %p26, %s28, %s19
      %p30 = scmp.ge.s32.totalorder %s29, 2
      %s31 = scalar_select %p30, 0, %s29
      %s32 = ssub.s32 %s19, %s31
      %s33 = ssub.s32 %s20, %s27
      %s34 = sor.u32 %s32, %s33
      %p35 = scmp.eq.s32.totalorder %s34, 0
      %s37 = sadd.s32 %s36, 1
      %s38 = scalar_select %p35, %s36, %s37
      %p41 = pneg %p35
      %p42 = scmp.eq.s32.totalorder %s12, 1
      %p43 = por %p41, %p42
      %p44 = scmp.ne.s32.totalorder %s36, %s39
      %p45 = scmp.eq.s32.totalorder %s12, 0
      %p46 = por %p44, %p45
      %p47 = scmp.ne.s32.totalorder %s36, %s39
      %p48 = scmp.eq.s32.totalorder %s17, 1
      %p49 = por %p47, %p48
      %p50 = scmp.ne.s32.totalorder %s39, %s40
      %p51 = scmp.eq.s32.totalorder %s17, 0
      %p52 = por %p50, %p51
      %p53 = scmp.ne.s32.totalorder %s39, %s40
      %p54 = scmp.eq.s32.totalorder %s18, 1
      %p55 = por %p53, %p54
      %p57 = scmp.ne.s32.totalorder %s40, %s56
      %p58 = scmp.eq.s32.totalorder %s18, 0
      %p59 = por %p57, %p58
      %s61 = sadd.s32 %s60, 1
      %p64 = scmp.eq.s32.totalorder %s12, 1
      %p65 = scmp.ne.s32.totalorder %s60, %s62
      %p66 = scmp.eq.s32.totalorder %s12, 0
      %p67 = por %p65, %p66
      %p68 = scmp.ne.s32.totalorder %s60, %s62
      %p69 = scmp.eq.s32.totalorder %s17, 1
      %p70 = por %p68, %p69
      %p71 = scmp.ne.s32.totalorder %s62, %s63
      %p72 = scmp.eq.s32.totalorder %s17, 0
      %p73 = por %p71, %p72
      %p74 = scmp.ne.s32.totalorder %s62, %s63
      %p75 = scmp.eq.s32.totalorder %s18, 1
      %p76 = por %p74, %p75
      %p78 = scmp.ne.s32.totalorder %s63, %s77
      %p79 = scmp.eq.s32.totalorder %s18, 0
      %p80 = por %p78, %p79
      %s81 = ssub.s32 %s19, %s31
      %p82 = scmp.eq.s32.totalorder %s81, 0
      %s84 = sadd.s32 %s83, 1
      %s85 = scalar_select %p82, %s83, %s84
      %p88 = pneg %p82
      %p89 = scmp.eq.s32.totalorder %s12, 1
      %p90 = por %p88, %p89
      %p91 = scmp.ne.s32.totalorder %s83, %s86
      %p92 = scmp.eq.s32.totalorder %s12, 0
      %p93 = por %p91, %p92
      %p94 = scmp.ne.s32.totalorder %s83, %s86
      %p95 = scmp.eq.s32.totalorder %s17, 1
      %p96 = por %p94, %p95
      %p97 = scmp.ne.s32.totalorder %s86, %s87
      %p98 = scmp.eq.s32.totalorder %s17, 0
      %p99 = por %p97, %p98
      %p100 = scmp.ne.s32.totalorder %s86, %s87
      %p101 = scmp.eq.s32.totalorder %s18, 1
      %p102 = por %p100, %p101
      %p104 = scmp.ne.s32.totalorder %s87, %s103
      %p105 = scmp.eq.s32.totalorder %s18, 0
      %p106 = por %p104, %p105
      %p107 = scmp.le.s32.totalorder 1, %s12
      %p108 = scmp.lt.s32.totalorder %s12, 3
      %p109 = pnand %p107, %p108
      %p110 = pneg %p109
      // Predicated region
      $region9: #{tpu_custom_call.1} parent=5 // pred_check
        _
      $region10: #{tpu_custom_call.1} parent=5 // pred_check_branch
        %112 = sbr.rel (%p109) target = $region12
      $region11: #{tpu_custom_call.1} parent=5 // pred_region
        %s113 = ssub.s32 %s12, 1
        // Predicated region
        $region13: #{tpu_custom_call.1} parent=11 // pred_check
          %p114 = pneg %p73
        $region14: #{tpu_custom_call.1} parent=11 // pred_check_branch
          %116 = sbr.rel (%p114) target = $region16
        $region15: #{tpu_custom_call.1} parent=11 // pred_region
          %118 = vsyncadd [#allocation6], 0
          %s120 = sshll.u32 %s1, 4
          %s121 = int_to_ptr.hbm [resolvable:$true] %s120
          %s122 = sshll.u32 [#allocation5], 4
          %s123 = int_to_ptr.vmem [resolvable:$true] %s122
          %125 = dma.hbm_to_vmem [thread:$0]  %s121, 64, %s123, [#allocation6]
        $region16: #{tpu_custom_call.1} parent=11 // pred_fallthru
          _
      $region12: #{tpu_custom_call.1} parent=5 // pred_fallthru
        _
      %p126 = scmp.lt.s32.totalorder %s12, 2
      // Predicated region
      $region17: #{tpu_custom_call.1} parent=5 // pred_check
        %p127 = pneg %p126
      $region18: #{tpu_custom_call.1} parent=5 // pred_check_branch
        %129 = sbr.rel (%p127) target = $region20
      $region19: #{tpu_custom_call.1} parent=5 // pred_region
        // Predicated region
        $region21: #{tpu_custom_call.1} parent=19 // pred_check
          %p130 = pneg %p46
        $region22: #{tpu_custom_call.1} parent=19 // pred_check_branch
          %132 = sbr.rel (%p130) target = $region24
        $region23: #{tpu_custom_call.1} parent=19 // pred_region
          %s133 = sand.u32 %s36, 1
          %s134 = scalar_lea.sflag [#allocation4], %s133
          %s135 = sand.u32 %s36, 1
          %s136 = smul.addr %s135, 512
          %s137 = scalar_lea.vmem [#allocation3], %s136
          %s138 = smul.u32 16, %s19
          %s139 = smul.u32 4, %s20
          %141 = vsyncadd %s134, 0
          %s142 = smul.addr %s138, 4
          %s143 = sadd.s32 %s139, %s142
          %s144 = smul.addr %s143, 8
          %s145 = scalar_lea.hbm %s0, %s144
          %s146 = sshll.u32 %s145, 4
          %s147 = int_to_ptr.hbm [resolvable:$true] %s146
          %s148 = sshll.u32 %s137, 4
          %s149 = int_to_ptr.vmem [resolvable:$true] %s148
          %154 = dma.hbm_to_vmem [thread:$0]  %s147, 8192, %s149, %s134, 512, 512, 32
        $region24: #{tpu_custom_call.1} parent=19 // pred_fallthru
          _
      $region20: #{tpu_custom_call.1} parent=5 // pred_fallthru
        _
      %p155 = scmp.le.s32.totalorder 1, %s12
      %p156 = scmp.lt.s32.totalorder %s12, 3
      %p157 = pnand %p155, %p156
      %p158 = pneg %p157
      // Predicated region
      $region25: #{tpu_custom_call.1} parent=5 // pred_check
        _
      $region26: #{tpu_custom_call.1} parent=5 // pred_check_branch
        %160 = sbr.rel (%p157) target = $region28
      $region27: #{tpu_custom_call.1} parent=5 // pred_region
        %s161 = ssub.s32 %s12, 1
        %s162 = sand.u32 %s39, 1
        %s163 = scalar_lea.sflag [#allocation4], %s162
        %s164 = sand.u32 %s39, 1
        %s165 = smul.addr %s164, 512
        %s166 = scalar_lea.vmem [#allocation3], %s165
        // Predicated region
        $region29: #{tpu_custom_call.1} parent=27 // pred_check
          %p167 = pneg %p52
        $region30: #{tpu_custom_call.1} parent=27 // pred_check_branch
          %169 = sbr.rel (%p167) target = $region32
        $region31: #{tpu_custom_call.1} parent=27 // pred_region
          %171 = dma.done %s163, 8192
        $region32: #{tpu_custom_call.1} parent=27 // pred_fallthru
          _
        // Predicated region
        $region33: #{tpu_custom_call.1} parent=27 // pred_check
          %p172 = pneg %p73
        $region34: #{tpu_custom_call.1} parent=27 // pred_check_branch
          %174 = sbr.rel (%p172) target = $region36
        $region35: #{tpu_custom_call.1} parent=27 // pred_region
          %176 = dma.done [#allocation6], 64
        $region36: #{tpu_custom_call.1} parent=27 // pred_fallthru
          _
        %s177 = sand.u32 %s39, 1
        %s178 = scalar_lea.sflag [#allocation4], %s177
        %s179 = sand.u32 %s39, 1
        %s180 = smul.addr %s179, 512
        %s181 = scalar_lea.vmem [#allocation3], %s180
        %p182 = pneg %p52
        %p183 = pneg %p49
        %p184 = pneg %p73
        %p185 = pneg %p70
        %p186 = pneg %p99
        %p187 = pneg %p96
        %s188 = smul.u32 16, %s21
        %p189 = scmp.lt.s32.totalorder %s188, 31
        %s190 = scalar_select %p189, %s188, 31
        %s191 = smul.addr %s190, 8
        %s192 = scalar_lea.vmem %s2, %s191
        %s193 = smul.u32 16, %s21
        %s194 = smul.u32 4, %s22
        %s195 = smul.u32 16, %s21
        %p196 = scmp.lt.s32.totalorder %s195, 31
        %s197 = scalar_select %p196, %s195, 31
        %s198 = smul.addr %s197, 8
        %s199 = scalar_lea.vmem %s2, %s198
        %s200 = smul.u32 16, %s21
        %p201 = scmp.eq.s32.totalorder %s22, 0
        // Predicated region
        $region37: #{tpu_custom_call.1} parent=27 // pred_check
          %p202 = pneg %p201
        $region38: #{tpu_custom_call.1} parent=27 // pred_check_branch
          %204 = sbr.rel (%p202) target = $region40
        $region39: #{tpu_custom_call.1} parent=27 // pred_region
          %205 = vst [vmem:[#allocation2] sm:$0xff] 0.0
          %206 = vst [vmem:[#allocation2 + $0x8] sm:$0xff] 0.0
          %207 = vst [vmem:[#allocation2 + $0x10] sm:$0xff] 0.0
          %208 = vst [vmem:[#allocation2 + $0x18] sm:$0xff] 0.0
          %209 = vst [vmem:[#allocation2 + $0x20] sm:$0xff] 0.0
          %210 = vst [vmem:[#allocation2 + $0x28] sm:$0xff] 0.0
          %211 = vst [vmem:[#allocation2 + $0x30] sm:$0xff] 0.0
          %212 = vst [vmem:[#allocation2 + $0x38] sm:$0xff] 0.0
          %213 = vst [vmem:[#allocation2 + $0x40] sm:$0xff] 0.0
          %214 = vst [vmem:[#allocation2 + $0x48] sm:$0xff] 0.0
          %215 = vst [vmem:[#allocation2 + $0x50] sm:$0xff] 0.0
          %216 = vst [vmem:[#allocation2 + $0x58] sm:$0xff] 0.0
          %217 = vst [vmem:[#allocation2 + $0x60] sm:$0xff] 0.0
          %218 = vst [vmem:[#allocation2 + $0x68] sm:$0xff] 0.0
          %219 = vst [vmem:[#allocation2 + $0x70] sm:$0xff] 0.0
          %220 = vst [vmem:[#allocation2 + $0x78] sm:$0xff] 0.0
        $region40: #{tpu_custom_call.1} parent=27 // pred_fallthru
          _
        %v221 = vld [vmem:[%s166] sm:$0xff]
        %v222 = vld [vmem:[%s166 + $0x8] sm:$0xff]
        %v223 = vld [vmem:[%s166 + $0x10] sm:$0xff]
        %v224 = vld [vmem:[%s166 + $0x18] sm:$0xff]
        %v225 = vld [vmem:[%s166 + $0x20] sm:$0xff]
        %v226 = vld [vmem:[%s166 + $0x28] sm:$0xff]
        %v227 = vld [vmem:[%s166 + $0x30] sm:$0xff]
        %v228 = vld [vmem:[%s166 + $0x38] sm:$0xff]
        %v229 = vld [vmem:[%s166 + $0x40] sm:$0xff]
        %v230 = vld [vmem:[%s166 + $0x48] sm:$0xff]
        %v231 = vld [vmem:[%s166 + $0x50] sm:$0xff]
        %v232 = vld [vmem:[%s166 + $0x58] sm:$0xff]
        %v233 = vld [vmem:[%s166 + $0x60] sm:$0xff]
        %v234 = vld [vmem:[%s166 + $0x68] sm:$0xff]
        %v235 = vld [vmem:[%s166 + $0x70] sm:$0xff]
        %v236 = vld [vmem:[%s166 + $0x78] sm:$0xff]
        %v237 = vld [vmem:[%s166 + $0x80] sm:$0xff]
        %v238 = vld [vmem:[%s166 + $0x88] sm:$0xff]
        %v239 = vld [vmem:[%s166 + $0x90] sm:$0xff]
        %v240 = vld [vmem:[%s166 + $0x98] sm:$0xff]
        %v241 = vld [vmem:[%s166 + $0xa0] sm:$0xff]
        %v242 = vld [vmem:[%s166 + $0xa8] sm:$0xff]
        %v243 = vld [vmem:[%s166 + $0xb0] sm:$0xff]
        %v244 = vld [vmem:[%s166 + $0xb8] sm:$0xff]
        %v245 = vld [vmem:[%s166 + $0xc0] sm:$0xff]
        %v246 = vld [vmem:[%s166 + $0xc8] sm:$0xff]
        %v247 = vld [vmem:[%s166 + $0xd0] sm:$0xff]
        %v248 = vld [vmem:[%s166 + $0xd8] sm:$0xff]
        %v249 = vld [vmem:[%s166 + $0xe0] sm:$0xff]
        %v250 = vld [vmem:[%s166 + $0xe8] sm:$0xff]
        %v251 = vld [vmem:[%s166 + $0xf0] sm:$0xff]
        %v252 = vld [vmem:[%s166 + $0xf8] sm:$0xff]
        %v253 = vld [vmem:[%s166 + $0x100] sm:$0xff]
        %v254 = vld [vmem:[%s166 + $0x108] sm:$0xff]
        %v255 = vld [vmem:[%s166 + $0x110] sm:$0xff]
        %v256 = vld [vmem:[%s166 + $0x118] sm:$0xff]
        %v257 = vld [vmem:[%s166 + $0x120] sm:$0xff]
        %v258 = vld [vmem:[%s166 + $0x128] sm:$0xff]
        %v259 = vld [vmem:[%s166 + $0x130] sm:$0xff]
        %v260 = vld [vmem:[%s166 + $0x138] sm:$0xff]
        %v261 = vld [vmem:[%s166 + $0x140] sm:$0xff]
        %v262 = vld [vmem:[%s166 + $0x148] sm:$0xff]
        %v263 = vld [vmem:[%s166 + $0x150] sm:$0xff]
        %v264 = vld [vmem:[%s166 + $0x158] sm:$0xff]
        %v265 = vld [vmem:[%s166 + $0x160] sm:$0xff]
        %v266 = vld [vmem:[%s166 + $0x168] sm:$0xff]
        %v267 = vld [vmem:[%s166 + $0x170] sm:$0xff]
        %v268 = vld [vmem:[%s166 + $0x178] sm:$0xff]
        %v269 = vld [vmem:[%s166 + $0x180] sm:$0xff]
        %v270 = vld [vmem:[%s166 + $0x188] sm:$0xff]
        %v271 = vld [vmem:[%s166 + $0x190] sm:$0xff]
        %v272 = vld [vmem:[%s166 + $0x198] sm:$0xff]
        %v273 = vld [vmem:[%s166 + $0x1a0] sm:$0xff]
        %v274 = vld [vmem:[%s166 + $0x1a8] sm:$0xff]
        %v275 = vld [vmem:[%s166 + $0x1b0] sm:$0xff]
        %v276 = vld [vmem:[%s166 + $0x1b8] sm:$0xff]
        %v277 = vld [vmem:[%s166 + $0x1c0] sm:$0xff]
        %v278 = vld [vmem:[%s166 + $0x1c8] sm:$0xff]
        %v279 = vld [vmem:[%s166 + $0x1d0] sm:$0xff]
        %v280 = vld [vmem:[%s166 + $0x1d8] sm:$0xff]
        %v281 = vld [vmem:[%s166 + $0x1e0] sm:$0xff]
        %v282 = vld [vmem:[%s166 + $0x1e8] sm:$0xff]
        %v283 = vld [vmem:[%s166 + $0x1f0] sm:$0xff]
        %v284 = vld [vmem:[%s166 + $0x1f8] sm:$0xff]
        %v285 = vld [vmem:[#allocation5] sm:$0xf]
        %v287 = vperm.slane %v285, 0
        %v288 = vperm.slane %v285, 1
        %v289 = vperm.slane %v285, 2
        %v290 = vperm.slane %v285, 3
        %v295 = vmul.f32 %v221, %v287
        %v296 = vmul.f32 %v222, %v288
        %v297 = vmul.f32 %v223, %v289
        %v298 = vmul.f32 %v224, %v290
        %v299 = vmul.f32 %v225, %v287
        %v300 = vmul.f32 %v226, %v288
        %v301 = vmul.f32 %v227, %v289
        %v302 = vmul.f32 %v228, %v290
        %v303 = vmul.f32 %v229, %v287
        %v304 = vmul.f32 %v230, %v288
        %v305 = vmul.f32 %v231, %v289
        %v306 = vmul.f32 %v232, %v290
        %v307 = vmul.f32 %v233, %v287
        %v308 = vmul.f32 %v234, %v288
        %v309 = vmul.f32 %v235, %v289
        %v310 = vmul.f32 %v236, %v290
        %v311 = vmul.f32 %v237, %v287
        %v312 = vmul.f32 %v238, %v288
        %v313 = vmul.f32 %v239, %v289
        %v314 = vmul.f32 %v240, %v290
        %v315 = vmul.f32 %v241, %v287
        %v316 = vmul.f32 %v242, %v288
        %v317 = vmul.f32 %v243, %v289
        %v318 = vmul.f32 %v244, %v290
        %v319 = vmul.f32 %v245, %v287
        %v320 = vmul.f32 %v246, %v288
        %v321 = vmul.f32 %v247, %v289
        %v322 = vmul.f32 %v248, %v290
        %v323 = vmul.f32 %v249, %v287
        %v324 = vmul.f32 %v250, %v288
        %v325 = vmul.f32 %v251, %v289
        %v326 = vmul.f32 %v252, %v290
        %v327 = vmul.f32 %v253, %v287
        %v328 = vmul.f32 %v254, %v288
        %v329 = vmul.f32 %v255, %v289
        %v330 = vmul.f32 %v256, %v290
        %v331 = vmul.f32 %v257, %v287
        %v332 = vmul.f32 %v258, %v288
        %v333 = vmul.f32 %v259, %v289
        %v334 = vmul.f32 %v260, %v290
        %v335 = vmul.f32 %v261, %v287
        %v336 = vmul.f32 %v262, %v288
        %v337 = vmul.f32 %v263, %v289
        %v338 = vmul.f32 %v264, %v290
        %v339 = vmul.f32 %v265, %v287
        %v340 = vmul.f32 %v266, %v288
        %v341 = vmul.f32 %v267, %v289
        %v342 = vmul.f32 %v268, %v290
        %v343 = vmul.f32 %v269, %v287
        %v344 = vmul.f32 %v270, %v288
        %v345 = vmul.f32 %v271, %v289
        %v346 = vmul.f32 %v272, %v290
        %v347 = vmul.f32 %v273, %v287
        %v348 = vmul.f32 %v274, %v288
        %v349 = vmul.f32 %v275, %v289
        %v350 = vmul.f32 %v276, %v290
        %v351 = vmul.f32 %v277, %v287
        %v352 = vmul.f32 %v278, %v288
        %v353 = vmul.f32 %v279, %v289
        %v354 = vmul.f32 %v280, %v290
        %v355 = vmul.f32 %v281, %v287
        %v356 = vmul.f32 %v282, %v288
        %v357 = vmul.f32 %v283, %v289
        %v358 = vmul.f32 %v284, %v290
        %v359 = vld [vmem:[#allocation2] sm:$0xff]
        %v360 = vld [vmem:[#allocation2 + $0x8] sm:$0xff]
        %v361 = vld [vmem:[#allocation2 + $0x10] sm:$0xff]
        %v362 = vld [vmem:[#allocation2 + $0x18] sm:$0xff]
        %v363 = vld [vmem:[#allocation2 + $0x20] sm:$0xff]
        %v364 = vld [vmem:[#allocation2 + $0x28] sm:$0xff]
        %v365 = vld [vmem:[#allocation2 + $0x30] sm:$0xff]
        %v366 = vld [vmem:[#allocation2 + $0x38] sm:$0xff]
        %v367 = vld [vmem:[#allocation2 + $0x40] sm:$0xff]
        %v368 = vld [vmem:[#allocation2 + $0x48] sm:$0xff]
        %v369 = vld [vmem:[#allocation2 + $0x50] sm:$0xff]
        %v370 = vld [vmem:[#allocation2 + $0x58] sm:$0xff]
        %v371 = vld [vmem:[#allocation2 + $0x60] sm:$0xff]
        %v372 = vld [vmem:[#allocation2 + $0x68] sm:$0xff]
        %v373 = vld [vmem:[#allocation2 + $0x70] sm:$0xff]
        %v374 = vld [vmem:[#allocation2 + $0x78] sm:$0xff]
        %v375 = vadd.f32 %v359, %v295
        %v376 = vadd.f32 %v360, %v299
        %v377 = vadd.f32 %v361, %v303
        %v378 = vadd.f32 %v362, %v307
        %v379 = vadd.f32 %v363, %v311
        %v380 = vadd.f32 %v364, %v315
        %v381 = vadd.f32 %v365, %v319
        %v382 = vadd.f32 %v366, %v323
        %v383 = vadd.f32 %v367, %v327
        %v384 = vadd.f32 %v368, %v331
        %v385 = vadd.f32 %v369, %v335
        %v386 = vadd.f32 %v370, %v339
        %v387 = vadd.f32 %v371, %v343
        %v388 = vadd.f32 %v372, %v347
        %v389 = vadd.f32 %v373, %v351
        %v390 = vadd.f32 %v374, %v355
        %v391 = vadd.f32 %v375, %v296
        %v392 = vadd.f32 %v376, %v300
        %v393 = vadd.f32 %v377, %v304
        %v394 = vadd.f32 %v378, %v308
        %v395 = vadd.f32 %v379, %v312
        %v396 = vadd.f32 %v380, %v316
        %v397 = vadd.f32 %v381, %v320
        %v398 = vadd.f32 %v382, %v324
        %v399 = vadd.f32 %v383, %v328
        %v400 = vadd.f32 %v384, %v332
        %v401 = vadd.f32 %v385, %v336
        %v402 = vadd.f32 %v386, %v340
        %v403 = vadd.f32 %v387, %v344
        %v404 = vadd.f32 %v388, %v348
        %v405 = vadd.f32 %v389, %v352
        %v406 = vadd.f32 %v390, %v356
        %v407 = vadd.f32 %v391, %v297
        %v408 = vadd.f32 %v392, %v301
        %v409 = vadd.f32 %v393, %v305
        %v410 = vadd.f32 %v394, %v309
        %v411 = vadd.f32 %v395, %v313
        %v412 = vadd.f32 %v396, %v317
        %v413 = vadd.f32 %v397, %v321
        %v414 = vadd.f32 %v398, %v325
        %v415 = vadd.f32 %v399, %v329
        %v416 = vadd.f32 %v400, %v333
        %v417 = vadd.f32 %v401, %v337
        %v418 = vadd.f32 %v402, %v341
        %v419 = vadd.f32 %v403, %v345
        %v420 = vadd.f32 %v404, %v349
        %v421 = vadd.f32 %v405, %v353
        %v422 = vadd.f32 %v406, %v357
        %v423 = vadd.f32 %v407, %v298
        %v424 = vadd.f32 %v408, %v302
        %v425 = vadd.f32 %v409, %v306
        %v426 = vadd.f32 %v410, %v310
        %v427 = vadd.f32 %v411, %v314
        %v428 = vadd.f32 %v412, %v318
        %v429 = vadd.f32 %v413, %v322
        %v430 = vadd.f32 %v414, %v326
        %v431 = vadd.f32 %v415, %v330
        %v432 = vadd.f32 %v416, %v334
        %v433 = vadd.f32 %v417, %v338
        %v434 = vadd.f32 %v418, %v342
        %v435 = vadd.f32 %v419, %v346
        %v436 = vadd.f32 %v420, %v350
        %v437 = vadd.f32 %v421, %v354
        %v438 = vadd.f32 %v422, %v358
        %439 = vst [vmem:[#allocation2] sm:$0xff] %v423
        %440 = vst [vmem:[#allocation2 + $0x8] sm:$0xff] %v424
        %441 = vst [vmem:[#allocation2 + $0x10] sm:$0xff] %v425
        %442 = vst [vmem:[#allocation2 + $0x18] sm:$0xff] %v426
        %443 = vst [vmem:[#allocation2 + $0x20] sm:$0xff] %v427
        %444 = vst [vmem:[#allocation2 + $0x28] sm:$0xff] %v428
        %445 = vst [vmem:[#allocation2 + $0x30] sm:$0xff] %v429
        %446 = vst [vmem:[#allocation2 + $0x38] sm:$0xff] %v430
        %447 = vst [vmem:[#allocation2 + $0x40] sm:$0xff] %v431
        %448 = vst [vmem:[#allocation2 + $0x48] sm:$0xff] %v432
        %449 = vst [vmem:[#allocation2 + $0x50] sm:$0xff] %v433
        %450 = vst [vmem:[#allocation2 + $0x58] sm:$0xff] %v434
        %451 = vst [vmem:[#allocation2 + $0x60] sm:$0xff] %v435
        %452 = vst [vmem:[#allocation2 + $0x68] sm:$0xff] %v436
        %453 = vst [vmem:[#allocation2 + $0x70] sm:$0xff] %v437
        %454 = vst [vmem:[#allocation2 + $0x78] sm:$0xff] %v438
        // Predicated region
        $region41: #{tpu_custom_call.1} parent=27 // pred_check
          %p455 = pneg %p201
        $region42: #{tpu_custom_call.1} parent=27 // pred_check_branch
          %457 = sbr.rel (%p455) target = $region44
        $region43: #{tpu_custom_call.1} parent=27 // pred_region
          %v458 = vld [vmem:[#allocation2] sm:$0xff]
          %v459 = vld [vmem:[#allocation2 + $0x8] sm:$0xff]
          %v460 = vld [vmem:[#allocation2 + $0x10] sm:$0xff]
          %v461 = vld [vmem:[#allocation2 + $0x18] sm:$0xff]
          %v462 = vld [vmem:[#allocation2 + $0x20] sm:$0xff]
          %v463 = vld [vmem:[#allocation2 + $0x28] sm:$0xff]
          %v464 = vld [vmem:[#allocation2 + $0x30] sm:$0xff]
          %v465 = vld [vmem:[#allocation2 + $0x38] sm:$0xff]
          %v466 = vld [vmem:[#allocation2 + $0x40] sm:$0xff]
          %v467 = vld [vmem:[#allocation2 + $0x48] sm:$0xff]
          %v468 = vld [vmem:[#allocation2 + $0x50] sm:$0xff]
          %v469 = vld [vmem:[#allocation2 + $0x58] sm:$0xff]
          %v470 = vld [vmem:[#allocation2 + $0x60] sm:$0xff]
          %v471 = vld [vmem:[#allocation2 + $0x68] sm:$0xff]
          %v472 = vld [vmem:[#allocation2 + $0x70] sm:$0xff]
          %v473 = vld [vmem:[#allocation2 + $0x78] sm:$0xff]
          %474 = vadd.xlane.f32.xlu0 %v458
          %v475 = vpop.xlane.xlu0 %474
          %476 = vadd.xlane.f32.xlu0 %v459
          %v477 = vpop.xlane.xlu0 %476
          %478 = vadd.xlane.f32.xlu0 %v460
          %v479 = vpop.xlane.xlu0 %478
          %480 = vadd.xlane.f32.xlu0 %v461
          %v481 = vpop.xlane.xlu0 %480
          %482 = vadd.xlane.f32.xlu0 %v462
          %v483 = vpop.xlane.xlu0 %482
          %484 = vadd.xlane.f32.xlu0 %v463
          %v485 = vpop.xlane.xlu0 %484
          %486 = vadd.xlane.f32.xlu0 %v464
          %v487 = vpop.xlane.xlu0 %486
          %488 = vadd.xlane.f32.xlu0 %v465
          %v489 = vpop.xlane.xlu0 %488
          %490 = vadd.xlane.f32.xlu0 %v466
          %v491 = vpop.xlane.xlu0 %490
          %492 = vadd.xlane.f32.xlu0 %v467
          %v493 = vpop.xlane.xlu0 %492
          %494 = vadd.xlane.f32.xlu0 %v468
          %v495 = vpop.xlane.xlu0 %494
          %496 = vadd.xlane.f32.xlu0 %v469
          %v497 = vpop.xlane.xlu0 %496
          %498 = vadd.xlane.f32.xlu0 %v470
          %v499 = vpop.xlane.xlu0 %498
          %500 = vadd.xlane.f32.xlu0 %v471
          %v501 = vpop.xlane.xlu0 %500
          %502 = vadd.xlane.f32.xlu0 %v472
          %v503 = vpop.xlane.xlu0 %502
          %504 = vadd.xlane.f32.xlu0 %v473
          %v505 = vpop.xlane.xlu0 %504
          %vm506 = vcmask 7168
          %507 = vst.msk [vmem:[%s199] sm:$0xff] %vm506, %v475
          %508 = vst.msk [vmem:[%s199 + $0x8] sm:$0xff] %vm506, %v477
          %509 = vst.msk [vmem:[%s199 + $0x10] sm:$0xff] %vm506, %v479
          %510 = vst.msk [vmem:[%s199 + $0x18] sm:$0xff] %vm506, %v481
          %511 = vst.msk [vmem:[%s199 + $0x20] sm:$0xff] %vm506, %v483
          %512 = vst.msk [vmem:[%s199 + $0x28] sm:$0xff] %vm506, %v485
          %513 = vst.msk [vmem:[%s199 + $0x30] sm:$0xff] %vm506, %v487
          %514 = vst.msk [vmem:[%s199 + $0x38] sm:$0xff] %vm506, %v489
          %515 = vst.msk [vmem:[%s199 + $0x40] sm:$0xff] %vm506, %v491
          %516 = vst.msk [vmem:[%s199 + $0x48] sm:$0xff] %vm506, %v493
          %517 = vst.msk [vmem:[%s199 + $0x50] sm:$0xff] %vm506, %v495
          %518 = vst.msk [vmem:[%s199 + $0x58] sm:$0xff] %vm506, %v497
          %519 = vst.msk [vmem:[%s199 + $0x60] sm:$0xff] %vm506, %v499
          %520 = vst.msk [vmem:[%s199 + $0x68] sm:$0xff] %vm506, %v501
          %521 = vst.msk [vmem:[%s199 + $0x70] sm:$0xff] %vm506, %v503
          %522 = vst.msk [vmem:[%s199 + $0x78] sm:$0xff] %vm506, %v505
        $region44: #{tpu_custom_call.1} parent=27 // pred_fallthru
          _
        %s523 = smul.u32 16, %s21
        %p524 = scmp.lt.s32.totalorder %s523, 31
        %s525 = scalar_select %p524, %s523, 31
        %s526 = smul.addr %s525, 8
        %s527 = scalar_lea.vmem %s2, %s526
        // Predicated region
        $region45: #{tpu_custom_call.1} parent=27 // pred_check
          %p528 = pneg %p96
        $region46: #{tpu_custom_call.1} parent=27 // pred_check_branch
          %530 = sbr.rel (%p528) target = $region48
        $region47: #{tpu_custom_call.1} parent=27 // pred_region
          %s531 = smul.u32 16, %s21
        $region48: #{tpu_custom_call.1} parent=27 // pred_fallthru
          _
      $region28: #{tpu_custom_call.1} parent=5 // pred_fallthru
        _
      %p532 = scmp.le.s32.totalorder 2, %s12
      // Predicated region
      $region49: #{tpu_custom_call.1} parent=5 // pred_check
        %p533 = pneg %p532
      $region50: #{tpu_custom_call.1} parent=5 // pred_check_branch
        %535 = sbr.rel (%p533) target = $region52
      $region51: #{tpu_custom_call.1} parent=5 // pred_region
        %s536 = ssub.s32 %s12, 2
        // Predicated region
        $region53: #{tpu_custom_call.1} parent=51 // pred_check
          %p537 = pneg %p102
        $region54: #{tpu_custom_call.1} parent=51 // pred_check_branch
          %539 = sbr.rel (%p537) target = $region56
        $region55: #{tpu_custom_call.1} parent=51 // pred_region
          %s540 = smul.u32 16, %s23
          %p541 = scmp.lt.s32.totalorder %s540, 31
          %s542 = scalar_select %p541, %s540, 31
          %s543 = smul.addr %s542, 8
          %s544 = scalar_lea.vmem %s2, %s543
        $region56: #{tpu_custom_call.1} parent=51 // pred_fallthru
          _
      $region52: #{tpu_custom_call.1} parent=5 // pred_fallthru
        _
    $region6: #{tpu_custom_call.1} parent=1 // loop_footer
      %s16 = sadd.s32 1, %s12
    $region7: #{tpu_custom_call.1} parent=1 // loop_footer_branch
      %11 = sbr.rel target = $region3
    $region8: #{tpu_custom_call.1} parent=1 // loop_exit
      _
    %545 = vsyncpa [#allocation4], 1
    %s546 = scalar_lea.sflag [#allocation4], 1
    %547 = vsyncpa %s546, 1
    %548 = vsyncpa [#allocation6], 1

</llo_original>
